<compile_context>
chip_gen: v5e
topology: v5e:2x2
jax: 0.10.0
libtpu: 0.0.40
codegen_flags: <defaults>
</compile_context>

<pallas_src>
import functools

import jax
import jax.numpy as jnp
from jax.experimental import pallas as pl
from jax.experimental.pallas import tpu as pltpu


def _layer_stack_kernel(x_ref, w1_ref, b1_ref, w2_ref, lnb_ref, o_ref,
                        acc_ref, y_ref, *, ln_eps, inv_d):
    l = pl.program_id(1)
    f = pl.program_id(2)
    n_l = pl.num_programs(1)
    n_f = pl.num_programs(2)

    # Row tile enters: seed the resident f32 residual accumulator from the
    # input block, once, at the first layer / first F-chunk.
    @pl.when((l == 0) & (f == 0))
    def _():
        acc_ref[...] = x_ref[...].astype(jnp.float32)

    # Once per layer (first F-chunk): pre-LayerNorm of the residual stream,
    # single-pass sum / sum-of-squares (two independent cross-lane reductions).
    # The normalized activations are cached at the MXU operand dtype (bf16)
    # and reused by every F-chunk of this layer.
    @pl.when(f == 0)
    def _():
        x = acc_ref[...]                                       # [TM, D] f32
        s1 = jnp.sum(x, axis=-1, keepdims=True)
        s2 = jnp.sum(x * x, axis=-1, keepdims=True)
        mean = s1 * inv_d
        var = s2 * inv_d - mean * mean
        y = (x - mean) * jax.lax.rsqrt(var + ln_eps)
        y = y * lnb_ref[0, :] + lnb_ref[1, :]                  # gamma, beta
        y_ref[...] = y.astype(y_ref.dtype)

    # FFN chunk over the hidden dim, accumulated directly into the resident
    # residual accumulator (no separate ffn scratch):
    #   acc += gelu(y @ W1[:, chunk] + b1[chunk]) @ W2[chunk, :]
    h = jnp.dot(y_ref[...], w1_ref[...], preferred_element_type=jnp.float32)
    h = jax.nn.gelu(h + b1_ref[0, :])                          # [TM, TF] f32
    acc_ref[...] += jnp.dot(h.astype(w2_ref.dtype), w2_ref[...],
                            preferred_element_type=jnp.float32)

    # Layer epilogue: output-projection bias added once per layer.
    @pl.when(f == n_f - 1)
    def _():
        acc_ref[...] += lnb_ref[2, :]                          # b2

    # Final layer of this row tile: emit the residual stream at output dtype.
    @pl.when((f == n_f - 1) & (l == n_l - 1))
    def _():
        o_ref[...] = acc_ref[...].astype(o_ref.dtype)


def _pick_tile(total, align, cap):
    """Largest divisor of `total` that is a multiple of `align` and <= cap;
    falls back to the full extent (always a legal block)."""
    if total % align != 0 or total <= cap:
        return total
    best = None
    t = align
    while t <= cap:
        if total % t == 0:
            best = t
        t += align
    return best if best is not None else total


def _tpu_vmem_capacity_bytes():
    """Physical VMEM (128 MiB on v5e/v6e, 64 MiB per-TC on v7x); conservative
    64 MiB fallback when hardware info is unavailable."""
    try:
        info = pltpu.get_tpu_info()
        return int(info.vmem_capacity_bytes)
    except Exception:  # pragma: no cover - non-TPU / older runtimes
        return 64 * 1024 * 1024


def layer_stack_forward(x, params, *, half_layers=False, ln_eps=1e-5,
                        tm=None, tf=None):
    """x: [B, S, D] residual stream. params: dict of stacked per-layer weights."""
    B, S, D = x.shape
    w1, b1, w2, b2, g, bt = (params["w1"], params["b1"], params["w2"],
                             params["b2"], params["ln_gamma"], params["ln_beta"])
    L, _, F = w1.shape
    # Eval-time semantics: no layer dropout -> all layers (or the first half).
    n_layers = L // 2 if half_layers else L
    assert n_layers >= 1
    T = B * S
    x2d = x.reshape(T, D)

    x_bytes = jnp.dtype(x.dtype).itemsize
    w_bytes = jnp.dtype(w1.dtype).itemsize

    vmem_cap = _tpu_vmem_capacity_bytes()
    # tm cap: weight-reuse / arithmetic-intensity target, bounded by VMEM class.
    tm_cap = 1024 if vmem_cap >= 96 * 1024 * 1024 else 512
    # bf16 residual stream needs (16, 128)-aligned row blocks; f32 needs (8, 128).
    align_m = 16 if x_bytes == 2 else 8
    if tm is None:
        tm = _pick_tile(T, align_m, tm_cap)

    # VMEM budget for tf: fixed resident cost (in/out row blocks double-buffered,
    # f32 accumulator + bf16 LN cache scratch, packed LN/bias tiles) plus a
    # per-tf cost (double-buffered W1+W2 tiles, (tm, tf) f32 intermediate and
    # its bf16 copy, b1 tile).  Keep the total within ~75% of physical VMEM.
    fixed = (4 * tm * D * x_bytes            # in + out blocks, double-buffered
             + tm * D * (4 + w_bytes)        # acc (f32) + cached LN (bf16)
             + 2 * 3 * D * 4)                # packed gamma/beta/b2 tiles
    per_tf = (4 * D * w_bytes                # W1 + W2 tiles, double-buffered
              + tm * (4 + w_bytes)           # (tm, tf) intermediate + bf16 copy
              + 2 * 4)                       # b1 tile
    usable = int(0.75 * vmem_cap)
    tf_budget = max(128, (usable - fixed) // max(per_tf, 1))
    tf_cap = max(512, (tf_budget // 128) * 128)
    if tf is None:
        tf = _pick_tile(F, 128, tf_cap)

    assert T % tm == 0 and F % tf == 0, (T, tm, F, tf)
    n_row_tiles = T // tm
    n_f = F // tf

    vmem_est = fixed + per_tf * tf
    vmem_limit = int(min(int(0.9 * vmem_cap),
                         max(32 * 1024 * 1024, 2 * vmem_est)))

    # Pack the three per-layer (D,)-vectors into one full-extent (3, D) block
    # (one DMA per layer instead of three sublane-1 DMAs); b1 gets a leading
    # singleton so its block is full-extent on the sublane axis too.
    lnb = jnp.stack([g.astype(jnp.float32), bt.astype(jnp.float32),
                     b2.astype(jnp.float32)], axis=1)            # (L, 3, D)
    b1_3d = b1.astype(jnp.float32).reshape(L, 1, F)              # (L, 1, F)

    kernel = functools.partial(_layer_stack_kernel, ln_eps=ln_eps, inv_d=1.0 / D)

    cost = pl.CostEstimate(
        flops=int(4 * T * D * F) * n_layers,
        transcendentals=int(T) * F * n_layers,
        bytes_accessed=int(n_row_tiles * n_layers * 2 * D * F * w_bytes
                           + 2 * T * D * x_bytes
                           + n_layers * (F + 3 * D) * 4),
    )

    out2d = pl.pallas_call(
        kernel,
        out_shape=jax.ShapeDtypeStruct((T, D), x.dtype),
        grid_spec=pltpu.PrefetchScalarGridSpec(
            num_scalar_prefetch=0,
            grid=(n_row_tiles, n_layers, n_f),
            in_specs=[
                # residual-stream input block, resident across layers/chunks
                pl.BlockSpec((tm, D), lambda r, l, f: (r, 0)),
                # per-layer weights, one (layer, F-chunk) tile per grid step
                pl.BlockSpec((pl.Squeezed(), D, tf), lambda r, l, f: (l, 0, f)),
                pl.BlockSpec((pl.Squeezed(), 1, tf), lambda r, l, f: (l, 0, f)),
                pl.BlockSpec((pl.Squeezed(), tf, D), lambda r, l, f: (l, f, 0)),
                # packed (gamma, beta, b2) for the layer
                pl.BlockSpec((pl.Squeezed(), 3, D), lambda r, l, f: (l, 0, 0)),
            ],
            out_specs=pl.BlockSpec((tm, D), lambda r, l, f: (r, 0)),
            scratch_shapes=[
                pltpu.VMEM((tm, D), jnp.float32),   # f32 residual accumulator
                pltpu.VMEM((tm, D), w1.dtype),      # cached LN output (MXU operand)
            ],
        ),
        compiler_params=pltpu.CompilerParams(
            dimension_semantics=("parallel", "arbitrary", "arbitrary"),
            vmem_limit_bytes=vmem_limit),
        cost_estimate=cost,
    )(x2d, w1, b1_3d, w2, lnb)

    return out2d.reshape(B, S, D)


def layer_stack_reference(x, params, *, half_layers=False, ln_eps=1e-5):
    """Pure-JAX reference mirroring LayerStack.forward semantics
    (same bf16 matmul operands / f32 accumulation as the kernel)."""
    w1, b1, w2, b2, g, bt = (params["w1"], params["b1"], params["w2"],
                             params["b2"], params["ln_gamma"], params["ln_beta"])
    L = w1.shape[0]
    n_layers = L // 2 if half_layers else L
    h = x.astype(jnp.float32)
    for l in range(n_layers):
        mean = jnp.mean(h, axis=-1, keepdims=True)
        var = jnp.mean((h - mean) ** 2, axis=-1, keepdims=True)
        y = (h - mean) * jax.lax.rsqrt(var + ln_eps) * g[l] + bt[l]
        a = jnp.dot(y.astype(w1.dtype), w1[l],
                    preferred_element_type=jnp.float32) + b1[l]
        f = jnp.dot(jax.nn.gelu(a).astype(w2.dtype), w2[l],
                    preferred_element_type=jnp.float32) + b2[l]
        h = h + f
    return h.astype(x.dtype)


def init_params(key, num_layers, d_model, d_ff, w_dtype=jnp.bfloat16,
                dtype=jnp.float32):
    ks = jax.random.split(key, 4)
    scale1 = 1.0 / jnp.sqrt(d_model)
    scale2 = 1.0 / jnp.sqrt(d_ff)
    return {
        # weights stored/streamed in bf16 (full-rate MXU, half the HBM bytes).
        # TODO(synk): optional fp8 weight path (per-channel scales folded into
        # b1 / epilogue) for v7x, which has no int MXU path.
        "w1": (jax.random.normal(ks[0], (num_layers, d_model, d_ff)) * scale1
               ).astype(w_dtype),
        "b1": jnp.zeros((num_layers, d_ff), dtype),
        "w2": (jax.random.normal(ks[1], (num_layers, d_ff, d_model)) * scale2
               ).astype(w_dtype),
        "b2": jnp.zeros((num_layers, d_model), dtype),
        "ln_gamma": jnp.ones((num_layers, d_model), dtype),
        "ln_beta": jnp.zeros((num_layers, d_model), dtype),
    }


if __name__ == "__main__":
    # TODO(synk): training-time layer dropout (random n_layers via host RNG) and
    # recompute_each_layer (gradient checkpointing) are host-side control flow,
    # not kernel compute; eval semantics (all layers / first half) implemented.
    B, S, D, F, L = 2, 8, 128, 256, 4
    key = jax.random.PRNGKey(0)
    kx, kp = jax.random.split(key)
    x = jax.random.normal(kx, (B, S, D), dtype=jnp.float32)
    params = init_params(kp, L, D, F)

    # tm=8 / tf=128 exercise both the row-parallel axis and the F-chunk axis.
    out = jax.block_until_ready(layer_stack_forward(x, params, tm=8, tf=128))
    ref = layer_stack_reference(x, params)
    assert out.shape == (B, S, D)
    err = float(jnp.max(jnp.abs(out - ref)))
    assert jnp.allclose(out, ref, atol=5e-3, rtol=5e-3), err

    # half_layers path (num_layers // 2), default (auto-tiled) blocking.
    out_half = jax.block_until_ready(
        layer_stack_forward(x, params, half_layers=True))
    ref_half = layer_stack_reference(x, params, half_layers=True)
    err_half = float(jnp.max(jnp.abs(out_half - ref_half)))
    assert jnp.allclose(out_half, ref_half, atol=5e-3, rtol=5e-3), err_half

    print("KERNEL_OK")
</pallas_src>

<mosaic_0001>
module attributes {stable_mosaic.version = 11 : i64} {
  func.func @_layer_stack_kernel(%arg0: i32, %arg1: i32, %arg2: i32, %arg3: memref<8x128xf32, #tpu.memory_space<vmem>>, %arg4: memref<1x128x128xbf16, #tpu.memory_space<vmem>>, %arg5: memref<1x1x128xf32, #tpu.memory_space<vmem>>, %arg6: memref<1x128x128xbf16, #tpu.memory_space<vmem>>, %arg7: memref<1x3x128xf32, #tpu.memory_space<vmem>>, %arg8: memref<8x128xf32, #tpu.memory_space<vmem>>, %arg9: memref<8x128xf32, #tpu.memory_space<vmem>>, %arg10: memref<8x128xbf16, #tpu.memory_space<vmem>>) attributes {dimension_semantics = [#tpu.dimension_semantics<parallel>, #tpu.dimension_semantics<arbitrary>, #tpu.dimension_semantics<arbitrary>], iteration_bounds = array<i64: 2, 4, 2>, scalar_prefetch = 0 : i64, scratch_operands = 2 : i64, tpu.core_type = #tpu.core_type<tc>, window_params = [{transform_indices = @transform_0, window_bounds = array<i64: 8, 128>}, {transform_indices = @transform_1, window_bounds = array<i64: 1, 128, 128>}, {transform_indices = @transform_2, window_bounds = array<i64: 1, 1, 128>}, {transform_indices = @transform_3, window_bounds = array<i64: 1, 128, 128>}, {transform_indices = @transform_4, window_bounds = array<i64: 1, 3, 128>}, {transform_indices = @transform_5, window_bounds = array<i64: 8, 128>}]} {
    %c0_i32 = arith.constant 0 : i32
    %0 = arith.cmpi eq, %arg1, %c0_i32 : i32
    %c0_i32_0 = arith.constant 0 : i32
    %1 = arith.cmpi eq, %arg2, %c0_i32_0 : i32
    %2 = arith.andi %0, %1 : i1
    %3 = arith.extui %2 : i1 to i32
    %c0_i32_1 = arith.constant 0 : i32
    %4 = arith.cmpi ne, %3, %c0_i32_1 : i32
    scf.if %4 {
      %c0_26 = arith.constant 0 : index
      %c0_27 = arith.constant 0 : index
      %45 = vector.load %arg3[%c0_26, %c0_27] : memref<8x128xf32, #tpu.memory_space<vmem>>, vector<8x128xf32>
      %c0_28 = arith.constant 0 : index
      %c0_29 = arith.constant 0 : index
      %46 = vector.load %arg9[%c0_28, %c0_29] : memref<8x128xf32, #tpu.memory_space<vmem>>, vector<8x128xf32>
      tpu.vector_store %arg9[%c0_28, %c0_29], %45 {strides = array<i32>} : memref<8x128xf32, #tpu.memory_space<vmem>>, vector<8x128xf32>,
    } else {
    }
    %c0_i32_2 = arith.constant 0 : i32
    %5 = arith.cmpi eq, %arg2, %c0_i32_2 : i32
    %6 = arith.extui %5 : i1 to i32
    %c0_i32_3 = arith.constant 0 : i32
    %7 = arith.cmpi ne, %6, %c0_i32_3 : i32
    scf.if %7 {
      %c0_26 = arith.constant 0 : index
      %c0_27 = arith.constant 0 : index
      %45 = vector.load %arg9[%c0_26, %c0_27] : memref<8x128xf32, #tpu.memory_space<vmem>>, vector<8x128xf32>
      %cst_28 = arith.constant dense<0.000000e+00> : vector<8xf32>
      %46 = vector.multi_reduction <add>, %45, %cst_28 [1] : vector<8x128xf32> to vector<8xf32>
      %47 = vector.shape_cast %46 : vector<8xf32> to vector<8x1xf32>
      %48 = arith.mulf %45, %45 : vector<8x128xf32>
      %cst_29 = arith.constant dense<0.000000e+00> : vector<8xf32>
      %49 = vector.multi_reduction <add>, %48, %cst_29 [1] : vector<8x128xf32> to vector<8xf32>
      %50 = vector.shape_cast %49 : vector<8xf32> to vector<8x1xf32>
      %cst_30 = arith.constant 7.812500e-03 : f32
      %51 = vector.broadcast %cst_30 : f32 to vector<8x1xf32>
      %52 = arith.mulf %47, %51 : vector<8x1xf32>
      %cst_31 = arith.constant 7.812500e-03 : f32
      %53 = vector.broadcast %cst_31 : f32 to vector<8x1xf32>
      %54 = arith.mulf %50, %53 : vector<8x1xf32>
      %55 = arith.mulf %52, %52 : vector<8x1xf32>
      %56 = arith.subf %54, %55 : vector<8x1xf32>
      %57 = vector.broadcast %52 : vector<8x1xf32> to vector<8x128xf32>
      %58 = arith.subf %45, %57 : vector<8x128xf32>
      %cst_32 = arith.constant 9.99999974E-6 : f32
      %59 = vector.broadcast %cst_32 : f32 to vector<8x1xf32>
      %60 = arith.addf %56, %59 : vector<8x1xf32>
      %61 = math.rsqrt %60 : vector<8x1xf32>
      %62 = vector.broadcast %61 : vector<8x1xf32> to vector<8x128xf32>
      %63 = arith.mulf %58, %62 : vector<8x128xf32>
      %c0_33 = arith.constant 0 : index
      %c0_34 = arith.constant 0 : index
      %c0_35 = arith.constant 0 : index
      %64 = vector.load %arg7[%c0_33, %c0_34, %c0_35] : memref<1x3x128xf32, #tpu.memory_space<vmem>>, vector<1x1x128xf32>
      %65 = vector.shape_cast %64 : vector<1x1x128xf32> to vector<128xf32>
      %66 = vector.shape_cast %65 : vector<128xf32> to vector<1x128xf32>
      %67 = vector.broadcast %66 : vector<1x128xf32> to vector<8x128xf32>
      %68 = arith.mulf %63, %67 : vector<8x128xf32>
      %c0_36 = arith.constant 0 : index
      %c1 = arith.constant 1 : index
      %c0_37 = arith.constant 0 : index
      %69 = vector.load %arg7[%c0_36, %c1, %c0_37] : memref<1x3x128xf32, #tpu.memory_space<vmem>>, vector<1x1x128xf32>
      %70 = vector.shape_cast %69 : vector<1x1x128xf32> to vector<128xf32>
      %71 = vector.shape_cast %70 : vector<128xf32> to vector<1x128xf32>
      %72 = vector.broadcast %71 : vector<1x128xf32> to vector<8x128xf32>
      %73 = arith.addf %68, %72 : vector<8x128xf32>
      %74 = arith.truncf %73 : vector<8x128xf32> to vector<8x128xbf16>
      %c0_38 = arith.constant 0 : index
      %c0_39 = arith.constant 0 : index
      %75 = vector.load %arg10[%c0_38, %c0_39] : memref<8x128xbf16, #tpu.memory_space<vmem>>, vector<8x128xbf16>
      tpu.vector_store %arg10[%c0_38, %c0_39], %74 {strides = array<i32>} : memref<8x128xbf16, #tpu.memory_space<vmem>>, vector<8x128xbf16>,
    } else {
    }
    %c0 = arith.constant 0 : index
    %c0_4 = arith.constant 0 : index
    %8 = vector.load %arg10[%c0, %c0_4] : memref<8x128xbf16, #tpu.memory_space<vmem>>, vector<8x128xbf16>
    %c0_5 = arith.constant 0 : index
    %c0_6 = arith.constant 0 : index
    %c0_7 = arith.constant 0 : index
    %9 = vector.load %arg4[%c0_5, %c0_6, %c0_7] : memref<1x128x128xbf16, #tpu.memory_space<vmem>>, vector<1x128x128xbf16>
    %10 = vector.shape_cast %9 : vector<1x128x128xbf16> to vector<128x128xbf16>
    %cst = arith.constant dense<0.000000e+00> : vector<8x128xf32>
    %11 = tpu.matmul %8, %10, %cst {dimension_numbers = #tpu.dot_dimension_numbers<[1], [0], [0], [1], [0, 0, 1, 1], [], []>} : vector<8x128xbf16>, vector<128x128xbf16>, vector<8x128xf32> -> vector<8x128xf32>
    %c0_8 = arith.constant 0 : index
    %c0_9 = arith.constant 0 : index
    %c0_10 = arith.constant 0 : index
    %12 = vector.load %arg5[%c0_8, %c0_9, %c0_10] : memref<1x1x128xf32, #tpu.memory_space<vmem>>, vector<1x1x128xf32>
    %13 = vector.shape_cast %12 : vector<1x1x128xf32> to vector<128xf32>
    %14 = vector.shape_cast %13 : vector<128xf32> to vector<1x128xf32>
    %15 = vector.broadcast %14 : vector<1x128xf32> to vector<8x128xf32>
    %16 = arith.addf %11, %15 : vector<8x128xf32>
    %17 = arith.mulf %16, %16 : vector<8x128xf32>
    %18 = arith.mulf %16, %17 : vector<8x128xf32>
    %cst_11 = arith.constant 4.471500e-02 : f32
    %19 = vector.broadcast %cst_11 : f32 to vector<8x128xf32>
    %20 = arith.mulf %19, %18 : vector<8x128xf32>
    %21 = arith.addf %16, %20 : vector<8x128xf32>
    %cst_12 = arith.constant 0.797884583 : f32
    %22 = vector.broadcast %cst_12 : f32 to vector<8x128xf32>
    %23 = arith.mulf %22, %21 : vector<8x128xf32>
    %24 = math.tanh %23 : vector<8x128xf32>
    %cst_13 = arith.constant 1.000000e+00 : f32
    %25 = vector.broadcast %cst_13 : f32 to vector<8x128xf32>
    %26 = arith.addf %25, %24 : vector<8x128xf32>
    %cst_14 = arith.constant 5.000000e-01 : f32
    %27 = vector.broadcast %cst_14 : f32 to vector<8x128xf32>
    %28 = arith.mulf %27, %26 : vector<8x128xf32>
    %29 = arith.mulf %16, %28 : vector<8x128xf32>
    %c0_15 = arith.constant 0 : index
    %c0_16 = arith.constant 0 : index
    %30 = vector.load %arg9[%c0_15, %c0_16] : memref<8x128xf32, #tpu.memory_space<vmem>>, vector<8x128xf32>
    %31 = arith.truncf %29 : vector<8x128xf32> to vector<8x128xbf16>
    %c0_17 = arith.constant 0 : index
    %c0_18 = arith.constant 0 : index
    %c0_19 = arith.constant 0 : index
    %32 = vector.load %arg6[%c0_17, %c0_18, %c0_19] : memref<1x128x128xbf16, #tpu.memory_space<vmem>>, vector<1x128x128xbf16>
    %33 = vector.shape_cast %32 : vector<1x128x128xbf16> to vector<128x128xbf16>
    %cst_20 = arith.constant dense<0.000000e+00> : vector<8x128xf32>
    %34 = tpu.matmul %31, %33, %cst_20 {dimension_numbers = #tpu.dot_dimension_numbers<[1], [0], [0], [1], [0, 0, 1, 1], [], []>} : vector<8x128xbf16>, vector<128x128xbf16>, vector<8x128xf32> -> vector<8x128xf32>
    %35 = arith.addf %30, %34 : vector<8x128xf32>
    %c0_21 = arith.constant 0 : index
    %c0_22 = arith.constant 0 : index
    %36 = vector.load %arg9[%c0_21, %c0_22] : memref<8x128xf32, #tpu.memory_space<vmem>>, vector<8x128xf32>
    tpu.vector_store %arg9[%c0_21, %c0_22], %35 {strides = array<i32>} : memref<8x128xf32, #tpu.memory_space<vmem>>, vector<8x128xf32>,
    %c1_i32 = arith.constant 1 : i32
    %37 = arith.cmpi eq, %arg2, %c1_i32 : i32
    %38 = arith.extui %37 : i1 to i32
    %c0_i32_23 = arith.constant 0 : i32
    %39 = arith.cmpi ne, %38, %c0_i32_23 : i32
    scf.if %39 {
      %c0_26 = arith.constant 0 : index
      %c0_27 = arith.constant 0 : index
      %45 = vector.load %arg9[%c0_26, %c0_27] : memref<8x128xf32, #tpu.memory_space<vmem>>, vector<8x128xf32>
      %c0_28 = arith.constant 0 : index
      %c2 = arith.constant 2 : index
      %c0_29 = arith.constant 0 : index
      %46 = vector.load %arg7[%c0_28, %c2, %c0_29] : memref<1x3x128xf32, #tpu.memory_space<vmem>>, vector<1x1x128xf32>
      %47 = vector.shape_cast %46 : vector<1x1x128xf32> to vector<128xf32>
      %48 = vector.shape_cast %47 : vector<128xf32> to vector<1x128xf32>
      %49 = vector.broadcast %48 : vector<1x128xf32> to vector<8x128xf32>
      %50 = arith.addf %45, %49 : vector<8x128xf32>
      %c0_30 = arith.constant 0 : index
      %c0_31 = arith.constant 0 : index
      %51 = vector.load %arg9[%c0_30, %c0_31] : memref<8x128xf32, #tpu.memory_space<vmem>>, vector<8x128xf32>
      tpu.vector_store %arg9[%c0_30, %c0_31], %50 {strides = array<i32>} : memref<8x128xf32, #tpu.memory_space<vmem>>, vector<8x128xf32>,
    } else {
    }
    %c1_i32_24 = arith.constant 1 : i32
    %40 = arith.cmpi eq, %arg2, %c1_i32_24 : i32
    %c3_i32 = arith.constant 3 : i32
    %41 = arith.cmpi eq, %arg1, %c3_i32 : i32
    %42 = arith.andi %40, %41 : i1
    %43 = arith.extui %42 : i1 to i32
    %c0_i32_25 = arith.constant 0 : i32
    %44 = arith.cmpi ne, %43, %c0_i32_25 : i32
    scf.if %44 {
      %c0_26 = arith.constant 0 : index
      %c0_27 = arith.constant 0 : index
      %45 = vector.load %arg9[%c0_26, %c0_27] : memref<8x128xf32, #tpu.memory_space<vmem>>, vector<8x128xf32>
      %c0_28 = arith.constant 0 : index
      %c0_29 = arith.constant 0 : index
      %46 = vector.load %arg8[%c0_28, %c0_29] : memref<8x128xf32, #tpu.memory_space<vmem>>, vector<8x128xf32>
      tpu.vector_store %arg8[%c0_28, %c0_29], %45 {strides = array<i32>} : memref<8x128xf32, #tpu.memory_space<vmem>>, vector<8x128xf32>,
    } else {
    }
    return
  }
  func.func @transform_0(%arg0: i32, %arg1: i32, %arg2: i32) -> (i32, i32) {
    %c0_i32 = arith.constant 0 : i32
    %c0_i32_0 = arith.constant 0 : i32
    return %arg0, %c0_i32 : i32, i32
  }
  func.func @transform_1(%arg0: i32, %arg1: i32, %arg2: i32) -> (i32, i32, i32) {
    %c0_i32 = arith.constant 0 : i32
    %c0_i32_0 = arith.constant 0 : i32
    return %arg1, %c0_i32, %arg2 : i32, i32, i32
  }
  func.func @transform_2(%arg0: i32, %arg1: i32, %arg2: i32) -> (i32, i32, i32) {
    %c0_i32 = arith.constant 0 : i32
    %c0_i32_0 = arith.constant 0 : i32
    return %arg1, %c0_i32, %arg2 : i32, i32, i32
  }
  func.func @transform_3(%arg0: i32, %arg1: i32, %arg2: i32) -> (i32, i32, i32) {
    %c0_i32 = arith.constant 0 : i32
    %c0_i32_0 = arith.constant 0 : i32
    return %arg1, %arg2, %c0_i32 : i32, i32, i32
  }
  func.func @transform_4(%arg0: i32, %arg1: i32, %arg2: i32) -> (i32, i32, i32) {
    %c0_i32 = arith.constant 0 : i32
    %c0_i32_0 = arith.constant 0 : i32
    %c0_i32_1 = arith.constant 0 : i32
    return %arg1, %c0_i32, %c0_i32_0 : i32, i32, i32
  }
  func.func @transform_5(%arg0: i32, %arg1: i32, %arg2: i32) -> (i32, i32) {
    %c0_i32 = arith.constant 0 : i32
    %c0_i32_0 = arith.constant 0 : i32
    return %arg0, %c0_i32 : i32, i32
  }
}

</mosaic_0001>

<llo_original>
// kernel: tpu_custom_call.1
$region0: #{tpu_custom_call.1}
  #allocation0 [shape = 'u32[]', space=smem, size = 0x4, offset = 0x4, fixed_abs, tag = 'smem constant byte address 0x4 - core index']
  #allocation1 [shape = 'u32[72,128]{1,0:T(1,128)}', space=vmem, size = 0x9000, scoped, tag = 'internal scratch']
  #allocation2 [shape = 'f32[8,128]{1,0:T(8,128)}', space=vmem, size = 0x1000, scoped, tag = 'scratch operand']
  #allocation3 [shape = 'bf16[8,128]{1,0:T(8,128)(2,1)}', space=vmem, size = 0x800, scoped, tag = 'scratch operand']
  %s0 = inlined_call_operand.vmem [shape: f32[16,128], index: 0, kind: input, shape index: {}]
  %s1 = inlined_call_operand.hbm [shape: bf16[4,128,256], index: 1, kind: input, shape index: {}]
  %s2 = inlined_call_operand.vmem [shape: f32[4,1,256], index: 2, kind: input, shape index: {}]
  %s3 = inlined_call_operand.hbm [shape: bf16[4,256,128], index: 3, kind: input, shape index: {}]
  %s4 = inlined_call_operand.vmem [shape: f32[4,3,128], index: 4, kind: input, shape index: {}]
  %s5 = inlined_call_operand.hbm [shape: f32[16,128], index: 5, kind: output, shape index: {}]
  %s6 = sld [smem:[#allocation0]]
  $region77: #{tpu_custom_call.1} parent=0
    _
  %s8 = ssub.s32 1, %s6
  %s9 = scalar_select 0, %s8, %s6
  $region1: #{tpu_custom_call.1} parent=0
    #allocation4 [shape = 'u8[65536]{0}', space=vmem, size = 0x10000, scoped, tag = 'input window, operand 1']
    #allocation5 [shape = 's32[2]{0}', space=sflag, size = 0x8, scoped, tag = 'scoped memory for tpu_custom_call.1']
    #allocation6 [shape = 's32[2]{0}', space=sflag, size = 0x8, scoped, tag = 'scoped memory for tpu_custom_call.1']
    #allocation7 [shape = 'u8[65536]{0}', space=vmem, size = 0x10000, scoped, tag = 'input window, operand 3']
    #allocation8 [shape = 's32[2]{0}', space=sflag, size = 0x8, scoped, tag = 'scoped memory for tpu_custom_call.1']
    #allocation9 [shape = 'u8[8192]{0}', space=vmem, size = 0x2000, scoped, tag = 'output window, operand 0']
    %10 = vsyncpa [#allocation5], 0
    %s11 = scalar_lea.sflag [#allocation5], 1
    %12 = vsyncpa %s11, 0
    %13 = vsyncpa [#allocation8], 0
    %s14 = scalar_lea.sflag [#allocation8], 1
    %15 = vsyncpa %s14, 0
    %16 = vsyncpa [#allocation6], 0
    %s17 = scalar_lea.sflag [#allocation6], 1
    %18 = vsyncpa %s17, 0
    loop: start=0, step=1, limit=18
    $region2: #{tpu_custom_call.1} parent=1 // loop_pre_header
      _
    $region3: #{tpu_custom_call.1} parent=1 // loop_header
      %s20 = sphi 0, %s24
      %p21 = scmp.ge.s32.totalorder %s20, 18
      %s27 = sphi 0, %s46
      %s28 = sphi 0, %s42
      %s29 = sphi 0, %s38
      %s30 = sphi 0, %s27
      %s31 = sphi 0, %s28
      %s32 = sphi 0, %s29
      %s33 = sphi 0, %s30
      %s34 = sphi 0, %s31
      %s35 = sphi 0, %s32
      %s49 = sphi 0, %s51
      %s52 = sphi 0, %s49
      %s53 = sphi 0, %s52
      %s69 = sphi 0, %s53
      %s77 = sphi 0, %s79
      %s80 = sphi 0, %s77
      %s81 = sphi 0, %s80
      %s97 = sphi 0, %s81
      %s105 = sphi 0, %s107
      %s108 = sphi 0, %s105
      %s109 = sphi 0, %s108
      %s125 = sphi 0, %s109
      %s133 = sphi 0, %s135
      %s136 = sphi 0, %s133
      %s137 = sphi 0, %s136
      %s153 = sphi 0, %s137
      %s159 = sphi 0, %s161
      %s162 = sphi 0, %s159
      %s163 = sphi 0, %s162
      %s179 = sphi 0, %s163
      %s185 = sphi 0, %s187
      %s188 = sphi 0, %s185
      %s189 = sphi 0, %s188
      %s205 = sphi 0, %s189
    $region4: #{tpu_custom_call.1} parent=1 // loop_header_branch
      %23 = sbr.rel (%p21) target = $region8
    $region5: #{tpu_custom_call.1} parent=1 // loop_body
      %s25 = ssub.s32 %s20, 1
      %s26 = ssub.s32 %s20, 2
      %s36 = sadd.s32 1, %s29
      %p37 = scmp.ge.s32.totalorder %s36, 2
      %s38 = scalar_select %p37, 0, %s36
      %s39 = sadd.s32 1, %s28
      %s40 = scalar_select %p37, %s39, %s28
      %p41 = scmp.ge.s32.totalorder %s40, 4
      %s42 = scalar_select %p41, 0, %s40
      %s43 = sadd.s32 1, %s27
      %s44 = scalar_select %p41, %s43, %s27
      %p45 = scmp.ge.s32.totalorder %s44, 2
      %s46 = scalar_select %p45, 0, %s44
      %s47 = ssub.s32 %s27, %s46
      %p48 = scmp.eq.s32.totalorder %s47, 0
      %s50 = sadd.s32 %s49, 1
      %s51 = scalar_select %p48, %s49, %s50
      %p54 = pneg %p48
      %p55 = scmp.eq.s32.totalorder %s20, 15
      %p56 = por %p54, %p55
      %p57 = scmp.ne.s32.totalorder %s49, %s52
      %p58 = scmp.eq.s32.totalorder %s20, 0
      %p59 = por %p57, %p58
      %p60 = scmp.ne.s32.totalorder %s49, %s52
      %p61 = scmp.eq.s32.totalorder %s25, 15
      %p62 = por %p60, %p61
      %p63 = scmp.ne.s32.totalorder %s52, %s53
      %p64 = scmp.eq.s32.totalorder %s25, 0
      %p65 = por %p63, %p64
      %p66 = scmp.ne.s32.totalorder %s52, %s53
      %p67 = scmp.eq.s32.totalorder %s26, 15
      %p68 = por %p66, %p67
      %p70 = scmp.ne.s32.totalorder %s53, %s69
      %p71 = scmp.eq.s32.totalorder %s26, 0
      %p72 = por %p70, %p71
      %s73 = ssub.s32 %s28, %s42
      %s74 = ssub.s32 %s29, %s38
      %s75 = sor.u32 %s73, %s74
      %p76 = scmp.eq.s32.totalorder %s75, 0
      %s78 = sadd.s32 %s77, 1
      %s79 = scalar_select %p76, %s77, %s78
      %p82 = pneg %p76
      %p83 = scmp.eq.s32.totalorder %s20, 15
      %p84 = por %p82, %p83
      %p85 = scmp.ne.s32.totalorder %s77, %s80
      %p86 = scmp.eq.s32.totalorder %s20, 0
      %p87 = por %p85, %p86
      %p88 = scmp.ne.s32.totalorder %s77, %s80
      %p89 = scmp.eq.s32.totalorder %s25, 15
      %p90 = por %p88, %p89
      %p91 = scmp.ne.s32.totalorder %s80, %s81
      %p92 = scmp.eq.s32.totalorder %s25, 0
      %p93 = por %p91, %p92
      %p94 = scmp.ne.s32.totalorder %s80, %s81
      %p95 = scmp.eq.s32.totalorder %s26, 15
      %p96 = por %p94, %p95
      %p98 = scmp.ne.s32.totalorder %s81, %s97
      %p99 = scmp.eq.s32.totalorder %s26, 0
      %p100 = por %p98, %p99
      %s101 = ssub.s32 %s28, %s42
      %s102 = ssub.s32 %s29, %s38
      %s103 = sor.u32 %s101, %s102
      %p104 = scmp.eq.s32.totalorder %s103, 0
      %s106 = sadd.s32 %s105, 1
      %s107 = scalar_select %p104, %s105, %s106
      %p110 = pneg %p104
      %p111 = scmp.eq.s32.totalorder %s20, 15
      %p112 = por %p110, %p111
      %p113 = scmp.ne.s32.totalorder %s105, %s108
      %p114 = scmp.eq.s32.totalorder %s20, 0
      %p115 = por %p113, %p114
      %p116 = scmp.ne.s32.totalorder %s105, %s108
      %p117 = scmp.eq.s32.totalorder %s25, 15
      %p118 = por %p116, %p117
      %p119 = scmp.ne.s32.totalorder %s108, %s109
      %p120 = scmp.eq.s32.totalorder %s25, 0
      %p121 = por %p119, %p120
      %p122 = scmp.ne.s32.totalorder %s108, %s109
      %p123 = scmp.eq.s32.totalorder %s26, 15
      %p124 = por %p122, %p123
      %p126 = scmp.ne.s32.totalorder %s109, %s125
      %p127 = scmp.eq.s32.totalorder %s26, 0
      %p128 = por %p126, %p127
      %s129 = ssub.s32 %s28, %s42
      %s130 = ssub.s32 %s29, %s38
      %s131 = sor.u32 %s129, %s130
      %p132 = scmp.eq.s32.totalorder %s131, 0
      %s134 = sadd.s32 %s133, 1
      %s135 = scalar_select %p132, %s133, %s134
      %p138 = pneg %p132
      %p139 = scmp.eq.s32.totalorder %s20, 15
      %p140 = por %p138, %p139
      %p141 = scmp.ne.s32.totalorder %s133, %s136
      %p142 = scmp.eq.s32.totalorder %s20, 0
      %p143 = por %p141, %p142
      %p144 = scmp.ne.s32.totalorder %s133, %s136
      %p145 = scmp.eq.s32.totalorder %s25, 15
      %p146 = por %p144, %p145
      %p147 = scmp.ne.s32.totalorder %s136, %s137
      %p148 = scmp.eq.s32.totalorder %s25, 0
      %p149 = por %p147, %p148
      %p150 = scmp.ne.s32.totalorder %s136, %s137
      %p151 = scmp.eq.s32.totalorder %s26, 15
      %p152 = por %p150, %p151
      %p154 = scmp.ne.s32.totalorder %s137, %s153
      %p155 = scmp.eq.s32.totalorder %s26, 0
      %p156 = por %p154, %p155
      %s157 = ssub.s32 %s28, %s42
      %p158 = scmp.eq.s32.totalorder %s157, 0
      %s160 = sadd.s32 %s159, 1
      %s161 = scalar_select %p158, %s159, %s160
      %p164 = pneg %p158
      %p165 = scmp.eq.s32.totalorder %s20, 15
      %p166 = por %p164, %p165
      %p167 = scmp.ne.s32.totalorder %s159, %s162
      %p168 = scmp.eq.s32.totalorder %s20, 0
      %p169 = por %p167, %p168
      %p170 = scmp.ne.s32.totalorder %s159, %s162
      %p171 = scmp.eq.s32.totalorder %s25, 15
      %p172 = por %p170, %p171
      %p173 = scmp.ne.s32.totalorder %s162, %s163
      %p174 = scmp.eq.s32.totalorder %s25, 0
      %p175 = por %p173, %p174
      %p176 = scmp.ne.s32.totalorder %s162, %s163
      %p177 = scmp.eq.s32.totalorder %s26, 15
      %p178 = por %p176, %p177
      %p180 = scmp.ne.s32.totalorder %s163, %s179
      %p181 = scmp.eq.s32.totalorder %s26, 0
      %p182 = por %p180, %p181
      %s183 = ssub.s32 %s27, %s46
      %p184 = scmp.eq.s32.totalorder %s183, 0
      %s186 = sadd.s32 %s185, 1
      %s187 = scalar_select %p184, %s185, %s186
      %p190 = pneg %p184
      %p191 = scmp.eq.s32.totalorder %s20, 15
      %p192 = por %p190, %p191
      %p193 = scmp.ne.s32.totalorder %s185, %s188
      %p194 = scmp.eq.s32.totalorder %s20, 0
      %p195 = por %p193, %p194
      %p196 = scmp.ne.s32.totalorder %s185, %s188
      %p197 = scmp.eq.s32.totalorder %s25, 15
      %p198 = por %p196, %p197
      %p199 = scmp.ne.s32.totalorder %s188, %s189
      %p200 = scmp.eq.s32.totalorder %s25, 0
      %p201 = por %p199, %p200
      %p202 = scmp.ne.s32.totalorder %s188, %s189
      %p203 = scmp.eq.s32.totalorder %s26, 15
      %p204 = por %p202, %p203
      %p206 = scmp.ne.s32.totalorder %s189, %s205
      %p207 = scmp.eq.s32.totalorder %s26, 0
      %p208 = por %p206, %p207
      %p209 = scmp.le.s32.totalorder 1, %s20
      %p210 = scmp.lt.s32.totalorder %s20, 17
      %p211 = pnand %p209, %p210
      %p212 = pneg %p211
      // Predicated region
      $region9: #{tpu_custom_call.1} parent=5 // pred_check
        _
      $region10: #{tpu_custom_call.1} parent=5 // pred_check_branch
        %214 = sbr.rel (%p211) target = $region12
      $region11: #{tpu_custom_call.1} parent=5 // pred_region
        %s215 = ssub.s32 %s20, 1
      $region12: #{tpu_custom_call.1} parent=5 // pred_fallthru
        _
      %p216 = scmp.lt.s32.totalorder %s20, 16
      // Predicated region
      $region13: #{tpu_custom_call.1} parent=5 // pred_check
        %p217 = pneg %p216
      $region14: #{tpu_custom_call.1} parent=5 // pred_check_branch
        %219 = sbr.rel (%p217) target = $region16
      $region15: #{tpu_custom_call.1} parent=5 // pred_region
        // Predicated region
        $region17: #{tpu_custom_call.1} parent=15 // pred_check
          %p220 = pneg %p59
        $region18: #{tpu_custom_call.1} parent=15 // pred_check_branch
          %222 = sbr.rel (%p220) target = $region20
        $region19: #{tpu_custom_call.1} parent=15 // pred_region
          %p223 = scmp.lt.s32.totalorder %s27, 1
          %s224 = scalar_select %p223, %s27, 1
          %s225 = smul.addr %s224, 8
          %s226 = scalar_lea.vmem %s0, %s225
        $region20: #{tpu_custom_call.1} parent=15 // pred_fallthru
          _
        // Predicated region
        $region21: #{tpu_custom_call.1} parent=15 // pred_check
          %p227 = pneg %p87
        $region22: #{tpu_custom_call.1} parent=15 // pred_check_branch
          %229 = sbr.rel (%p227) target = $region24
        $region23: #{tpu_custom_call.1} parent=15 // pred_region
          %s230 = sand.u32 %s77, 1
          %s231 = scalar_lea.sflag [#allocation5], %s230
          %s232 = sand.u32 %s77, 1
          %s233 = smul.addr %s232, 64
          %s234 = scalar_lea.vmem [#allocation4], %s233
          %236 = vsyncadd %s231, 0
          %s237 = smul.addr %s28, 32
          %s238 = sadd.s32 %s29, %s237
          %s239 = smul.addr %s238, 4
          %s240 = scalar_lea.hbm %s1, %s239
          %s241 = sshll.u32 %s240, 4
          %s242 = int_to_ptr.hbm [resolvable:$true] %s241
          %s243 = sshll.u32 %s234, 4
          %s244 = int_to_ptr.vmem [resolvable:$true] %s243
          %249 = dma.hbm_to_vmem [thread:$0]  %s242, 1024, %s244, %s231, 128, 64, 4
        $region24: #{tpu_custom_call.1} parent=15 // pred_fallthru
          _
        // Predicated region
        $region25: #{tpu_custom_call.1} parent=15 // pred_check
          %p250 = pneg %p115
        $region26: #{tpu_custom_call.1} parent=15 // pred_check_branch
          %252 = sbr.rel (%p250) target = $region28
        $region27: #{tpu_custom_call.1} parent=15 // pred_region
          %p253 = scmp.lt.s32.totalorder %s28, 3
          %s254 = scalar_select %p253, %s28, 3
          %p255 = scmp.lt.s32.totalorder %s29, 1
          %s256 = scalar_select %p255, %s29, 1
          %s257 = smul.addr %s254, 2
          %s258 = sadd.s32 %s256, %s257
          %s259 = scalar_lea.vmem %s2, %s258
        $region28: #{tpu_custom_call.1} parent=15 // pred_fallthru
          _
        // Predicated region
        $region29: #{tpu_custom_call.1} parent=15 // pred_check
          %p260 = pneg %p143
        $region30: #{tpu_custom_call.1} parent=15 // pred_check_branch
          %262 = sbr.rel (%p260) target = $region32
        $region31: #{tpu_custom_call.1} parent=15 // pred_region
          %s263 = sand.u32 %s133, 1
          %s264 = scalar_lea.sflag [#allocation8], %s263
          %s265 = sand.u32 %s133, 1
          %s266 = smul.addr %s265, 64
          %s267 = scalar_lea.vmem [#allocation7], %s266
          %s268 = smul.u32 16, %s29
          %270 = vsyncadd %s264, 0
          %s271 = smul.addr %s28, 32
          %s272 = sadd.s32 %s268, %s271
          %s273 = smul.addr %s272, 4
          %s274 = scalar_lea.hbm %s3, %s273
          %s275 = sshll.u32 %s274, 4
          %s276 = int_to_ptr.hbm [resolvable:$true] %s275
          %s277 = sshll.u32 %s267, 4
          %s278 = int_to_ptr.vmem [resolvable:$true] %s277
          %283 = dma.hbm_to_vmem [thread:$0]  %s276, 1024, %s278, %s264, 64, 64, 4
        $region32: #{tpu_custom_call.1} parent=15 // pred_fallthru
          _
        // Predicated region
        $region33: #{tpu_custom_call.1} parent=15 // pred_check
          %p284 = pneg %p169
        $region34: #{tpu_custom_call.1} parent=15 // pred_check_branch
          %286 = sbr.rel (%p284) target = $region36
        $region35: #{tpu_custom_call.1} parent=15 // pred_region
          %p287 = scmp.lt.s32.totalorder %s28, 3
          %s288 = scalar_select %p287, %s28, 3
          %s289 = smul.addr %s288, 4
          %s290 = scalar_lea.vmem %s4, %s289
        $region36: #{tpu_custom_call.1} parent=15 // pred_fallthru
          _
      $region16: #{tpu_custom_call.1} parent=5 // pred_fallthru
        _
      %p291 = scmp.le.s32.totalorder 1, %s20
      %p292 = scmp.lt.s32.totalorder %s20, 17
      %p293 = pnand %p291, %p292
      %p294 = pneg %p293
      // Predicated region
      $region37: #{tpu_custom_call.1} parent=5 // pred_check
        _
      $region38: #{tpu_custom_call.1} parent=5 // pred_check_branch
        %296 = sbr.rel (%p293) target = $region40
      $region39: #{tpu_custom_call.1} parent=5 // pred_region
        %s297 = ssub.s32 %s20, 1
        %s298 = sand.u32 %s80, 1
        %s299 = scalar_lea.sflag [#allocation5], %s298
        %s300 = sand.u32 %s80, 1
        %s301 = smul.addr %s300, 64
        %s302 = scalar_lea.vmem [#allocation4], %s301
        // Predicated region
        $region41: #{tpu_custom_call.1} parent=39 // pred_check
          %p303 = pneg %p93
        $region42: #{tpu_custom_call.1} parent=39 // pred_check_branch
          %305 = sbr.rel (%p303) target = $region44
        $region43: #{tpu_custom_call.1} parent=39 // pred_region
          %307 = dma.done %s299, 1024
        $region44: #{tpu_custom_call.1} parent=39 // pred_fallthru
          _
        %s308 = sand.u32 %s136, 1
        %s309 = scalar_lea.sflag [#allocation8], %s308
        %s310 = sand.u32 %s136, 1
        %s311 = smul.addr %s310, 64
        %s312 = scalar_lea.vmem [#allocation7], %s311
        // Predicated region
        $region45: #{tpu_custom_call.1} parent=39 // pred_check
          %p313 = pneg %p149
        $region46: #{tpu_custom_call.1} parent=39 // pred_check_branch
          %315 = sbr.rel (%p313) target = $region48
        $region47: #{tpu_custom_call.1} parent=39 // pred_region
          %317 = dma.done %s309, 1024
        $region48: #{tpu_custom_call.1} parent=39 // pred_fallthru
          _
        %p318 = scmp.lt.s32.totalorder %s30, 1
        %s319 = scalar_select %p318, %s30, 1
        %s320 = smul.addr %s319, 8
        %s321 = scalar_lea.vmem %s0, %s320
        %p322 = pneg %p65
        %p323 = pneg %p62
        %s324 = sand.u32 %s80, 1
        %s325 = scalar_lea.sflag [#allocation5], %s324
        %s326 = sand.u32 %s80, 1
        %s327 = smul.addr %s326, 64
        %s328 = scalar_lea.vmem [#allocation4], %s327
        %p329 = pneg %p93
        %p330 = pneg %p90
        %p331 = scmp.lt.s32.totalorder %s31, 3
        %s332 = scalar_select %p331, %s31, 3
        %p333 = scmp.lt.s32.totalorder %s32, 1
        %s334 = scalar_select %p333, %s32, 1
        %s335 = smul.addr %s332, 2
        %s336 = sadd.s32 %s334, %s335
        %s337 = scalar_lea.vmem %s2, %s336
        %p338 = pneg %p121
        %p339 = pneg %p118
        %s340 = sand.u32 %s136, 1
        %s341 = scalar_lea.sflag [#allocation8], %s340
        %s342 = sand.u32 %s136, 1
        %s343 = smul.addr %s342, 64
        %s344 = scalar_lea.vmem [#allocation7], %s343
        %p345 = pneg %p149
        %p346 = pneg %p146
        %p347 = scmp.lt.s32.totalorder %s31, 3
        %s348 = scalar_select %p347, %s31, 3
        %s349 = smul.addr %s348, 4
        %s350 = scalar_lea.vmem %s4, %s349
        %p351 = pneg %p175
        %p352 = pneg %p172
        %p353 = pneg %p201
        %p354 = pneg %p198
        %s355 = sand.u32 %s188, 1
        %s356 = scalar_lea.sflag [#allocation6], %s355
        %s357 = sand.u32 %s188, 1
        %s358 = smul.addr %s357, 8
        %s359 = scalar_lea.vmem [#allocation9], %s358
        %p360 = scmp.lt.s32.totalorder %s30, 1
        %s361 = scalar_select %p360, %s30, 1
        %s362 = smul.addr %s361, 8
        %s363 = scalar_lea.vmem %s0, %s362
        %p364 = scmp.lt.s32.totalorder %s31, 3
        %s365 = scalar_select %p364, %s31, 3
        %p366 = scmp.lt.s32.totalorder %s32, 1
        %s367 = scalar_select %p366, %s32, 1
        %s368 = smul.addr %s365, 2
        %s369 = sadd.s32 %s367, %s368
        %s370 = scalar_lea.vmem %s2, %s369
        %s371 = smul.u32 16, %s32
        %p372 = scmp.lt.s32.totalorder %s31, 3
        %s373 = scalar_select %p372, %s31, 3
        %s374 = smul.addr %s373, 4
        %s375 = scalar_lea.vmem %s4, %s374
        %p376 = scmp.eq.s32.totalorder %s31, 0
        %p377 = scmp.eq.s32.totalorder %s32, 0
        %p378 = pnand %p376, %p377
        %p379 = pneg %p378
        // Predicated region
        $region49: #{tpu_custom_call.1} parent=39 // pred_check
          _
        $region50: #{tpu_custom_call.1} parent=39 // pred_check_branch
          %381 = sbr.rel (%p378) target = $region52
        $region51: #{tpu_custom_call.1} parent=39 // pred_region
          %v382 = vld [vmem:[%s363] sm:$0xff]
          %383 = vst [vmem:[#allocation2] sm:$0xff] %v382
        $region52: #{tpu_custom_call.1} parent=39 // pred_fallthru
          _
        // Predicated region
        $region53: #{tpu_custom_call.1} parent=39 // pred_check
          %p384 = pneg %p377
        $region54: #{tpu_custom_call.1} parent=39 // pred_check_branch
          %386 = sbr.rel (%p384) target = $region56
        $region55: #{tpu_custom_call.1} parent=39 // pred_region
          %v387 = vld [vmem:[#allocation2] sm:$0xff]
          %388 = vadd.xlane.f32.xlu0 %v387
          %v389 = vpop.xlane.xlu0 %388
          %v390 = vmul.f32 %v387, %v387
          %391 = vadd.xlane.f32.xlu0 %v390
          %v392 = vpop.xlane.xlu0 %391
          %v393 = vmul.f32 %v389, 0.0078125
          %v394 = vmul.f32 %v392, 0.0078125
          %v395 = vmul.f32 %v393, %v393
          %v396 = vsub.f32 %v394, %v395
          %v397 = vsub.f32 %v387, %v393
          %v398 = vadd.f32 %v396, 1e-05
          %v399 = vrsqrt.pop %v398
          %v400 = vmul.f32 %v399, %v398
          %v401 = vmul.f32 %v400, %v399
          %v402 = vmul.f32 0.5, %v401
          %v403 = vsub.f32 1.5, %v402
          %v404 = vmul.f32 %v399, %v403
          %vm405 = vweird.f32 %v398
          %vm406 = vweird.f32 %v399
          %vm407 = vmor %vm405, %vm406
          %v408 = vsel %vm407, %v399, %v404
          %v409 = vmul.f32 %v397, %v408
          %v410 = vld [vmem:[%s375] sm:$0x1]
          %v411 = vperm.slane %v410, 0
          %v412 = vmul.f32 %v409, %v411
          %v413 = vld [vmem:[%s375 + $0x1] sm:$0x1]
          %v414 = vperm.slane %v413, 0
          %v415 = vadd.f32 %v412, %v414
          %v416 = vpack.c.bf16 %v415, %v415
          %417 = vst [vmem:[#allocation3] sm:$0xf] %v416
        $region56: #{tpu_custom_call.1} parent=39 // pred_fallthru
          _
        %v418 = vld [vmem:[#allocation3] sm:$0xf]
        %v419 = vld [vmem:[%s302] sm:$0xf]
        %v420 = vld [vmem:[%s302 + $0x4] sm:$0xf]
        %v421 = vld [vmem:[%s302 + $0x8] sm:$0xf]
        %v422 = vld [vmem:[%s302 + $0xc] sm:$0xf]
        %v423 = vld [vmem:[%s302 + $0x10] sm:$0xf]
        %v424 = vld [vmem:[%s302 + $0x14] sm:$0xf]
        %v425 = vld [vmem:[%s302 + $0x18] sm:$0xf]
        %v426 = vld [vmem:[%s302 + $0x1c] sm:$0xf]
        %v427 = vld [vmem:[%s302 + $0x20] sm:$0xf]
        %v428 = vld [vmem:[%s302 + $0x24] sm:$0xf]
        %v429 = vld [vmem:[%s302 + $0x28] sm:$0xf]
        %v430 = vld [vmem:[%s302 + $0x2c] sm:$0xf]
        %v431 = vld [vmem:[%s302 + $0x30] sm:$0xf]
        %v432 = vld [vmem:[%s302 + $0x34] sm:$0xf]
        %v433 = vld [vmem:[%s302 + $0x38] sm:$0xf]
        %v434 = vld [vmem:[%s302 + $0x3c] sm:$0xf]
        %v435 = vld [vmem:[%s370] sm:$0x1]
        %v437 = vperm.slane %v435, 0
        %v455 = vunpack.c.l.b16 %v419
        %v456 = vunpack.c.l.b16 %v420
        %v457 = vunpack.c.l.b16 %v421
        %v458 = vunpack.c.l.b16 %v422
        %v459 = vunpack.c.l.b16 %v423
        %v460 = vunpack.c.l.b16 %v424
        %v461 = vunpack.c.l.b16 %v425
        %v462 = vunpack.c.l.b16 %v426
        %v463 = vunpack.c.l.b16 %v427
        %v464 = vunpack.c.l.b16 %v428
        %v465 = vunpack.c.l.b16 %v429
        %v466 = vunpack.c.l.b16 %v430
        %v467 = vunpack.c.l.b16 %v431
        %v468 = vunpack.c.l.b16 %v432
        %v469 = vunpack.c.l.b16 %v433
        %v470 = vunpack.c.l.b16 %v434
        %v471 = vpack.c.b16 %v456, %v455
        %v472 = vpack.c.b16 %v458, %v457
        %v473 = vpack.c.b16 %v460, %v459
        %v474 = vpack.c.b16 %v462, %v461
        %v475 = vpack.c.b16 %v464, %v463
        %v476 = vpack.c.b16 %v466, %v465
        %v477 = vpack.c.b16 %v468, %v467
        %v478 = vpack.c.b16 %v470, %v469
        %487 = vmatpush.bf16.msra.mxu0 %v478
        %488 = vmatpush.bf16.msra.mxu0 %v477
        %489 = vmatpush.bf16.msra.mxu0 %v476
        %490 = vmatpush.bf16.msra.mxu0 %v475
        %491 = vmatpush.bf16.msra.mxu0 %v474
        %492 = vmatpush.bf16.msra.mxu0 %v473
        %493 = vmatpush.bf16.msra.mxu0 %v472
        %494 = vmatpush.bf16.msra.mxu0 %v471
        %495 = vmatmul.bf16.gmra.mxu0 %v418
        %v496 = vpop.f32.mrf.mxu0
        %v497 = vadd.f32 %v437, %v496
        %v498 = vpop.f32.mrf.mxu0
        %499 = vdwg.mxu0
        %v500 = vmul.f32 %v497, %v497
        %v501 = vmul.f32 %v497, %v500
        %v502 = vmul.f32 %v501, 0.044715
        %v503 = vadd.f32 %v497, %v502
        %v504 = vmul.f32 %v503, 0.7978846
        %v505 = vtanh.pop %v504
        %v506 = vadd.f32 %v505, 1.0
        %v507 = vmul.f32 %v506, 0.5
        %v508 = vmul.f32 %v497, %v507
        %v509 = vld [vmem:[#allocation2] sm:$0xff]
        %v510 = vpack.c.bf16 %v508, %v508
        %v511 = vld [vmem:[%s312] sm:$0xf]
        %v512 = vld [vmem:[%s312 + $0x4] sm:$0xf]
        %v513 = vld [vmem:[%s312 + $0x8] sm:$0xf]
        %v514 = vld [vmem:[%s312 + $0xc] sm:$0xf]
        %v515 = vld [vmem:[%s312 + $0x10] sm:$0xf]
        %v516 = vld [vmem:[%s312 + $0x14] sm:$0xf]
        %v517 = vld [vmem:[%s312 + $0x18] sm:$0xf]
        %v518 = vld [vmem:[%s312 + $0x1c] sm:$0xf]
        %v519 = vld [vmem:[%s312 + $0x20] sm:$0xf]
        %v520 = vld [vmem:[%s312 + $0x24] sm:$0xf]
        %v521 = vld [vmem:[%s312 + $0x28] sm:$0xf]
        %v522 = vld [vmem:[%s312 + $0x2c] sm:$0xf]
        %v523 = vld [vmem:[%s312 + $0x30] sm:$0xf]
        %v524 = vld [vmem:[%s312 + $0x34] sm:$0xf]
        %v525 = vld [vmem:[%s312 + $0x38] sm:$0xf]
        %v526 = vld [vmem:[%s312 + $0x3c] sm:$0xf]
        %v543 = vunpack.c.l.b16 %v511
        %v544 = vunpack.c.l.b16 %v512
        %v545 = vunpack.c.l.b16 %v513
        %v546 = vunpack.c.l.b16 %v514
        %v547 = vunpack.c.l.b16 %v515
        %v548 = vunpack.c.l.b16 %v516
        %v549 = vunpack.c.l.b16 %v517
        %v550 = vunpack.c.l.b16 %v518
        %v551 = vunpack.c.l.b16 %v519
        %v552 = vunpack.c.l.b16 %v520
        %v553 = vunpack.c.l.b16 %v521
        %v554 = vunpack.c.l.b16 %v522
        %v555 = vunpack.c.l.b16 %v523
        %v556 = vunpack.c.l.b16 %v524
        %v557 = vunpack.c.l.b16 %v525
        %v558 = vunpack.c.l.b16 %v526
        %v559 = vpack.c.b16 %v544, %v543
        %v560 = vpack.c.b16 %v546, %v545
        %v561 = vpack.c.b16 %v548, %v547
        %v562 = vpack.c.b16 %v550, %v549
        %v563 = vpack.c.b16 %v552, %v551
        %v564 = vpack.c.b16 %v554, %v553
        %v565 = vpack.c.b16 %v556, %v555
        %v566 = vpack.c.b16 %v558, %v557
        %575 = vmatpush.bf16.msra.mxu0 %v566
        %576 = vmatpush.bf16.msra.mxu0 %v565
        %577 = vmatpush.bf16.msra.mxu0 %v564
        %578 = vmatpush.bf16.msra.mxu0 %v563
        %579 = vmatpush.bf16.msra.mxu0 %v562
        %580 = vmatpush.bf16.msra.mxu0 %v561
        %581 = vmatpush.bf16.msra.mxu0 %v560
        %582 = vmatpush.bf16.msra.mxu0 %v559
        %583 = vmatmul.bf16.gmra.mxu0 %v510
        %v584 = vpop.f32.mrf.mxu0
        %v585 = vadd.f32 0.0, %v584
        %v586 = vpop.f32.mrf.mxu0
        %587 = vdwg.mxu0
        %v588 = vadd.f32 %v509, %v585
        %589 = vst [vmem:[#allocation2] sm:$0xff] %v588
        %p590 = scmp.eq.s32.totalorder %s32, 1
        // Predicated region
        $region57: #{tpu_custom_call.1} parent=39 // pred_check
          %p591 = pneg %p590
        $region58: #{tpu_custom_call.1} parent=39 // pred_check_branch
          %593 = sbr.rel (%p591) target = $region60
        $region59: #{tpu_custom_call.1} parent=39 // pred_region
          %v594 = vld [vmem:[#allocation2] sm:$0xff]
          %v595 = vld [vmem:[%s375 + $0x2] sm:$0x1]
          %v596 = vperm.slane %v595, 0
          %v597 = vadd.f32 %v594, %v596
          %598 = vst [vmem:[#allocation2] sm:$0xff] %v597
        $region60: #{tpu_custom_call.1} parent=39 // pred_fallthru
          _
        %p599 = scmp.eq.s32.totalorder %s31, 3
        %p600 = pnand %p590, %p599
        %p601 = pneg %p600
        // Predicated region
        $region61: #{tpu_custom_call.1} parent=39 // pred_check
          _
        $region62: #{tpu_custom_call.1} parent=39 // pred_check_branch
          %603 = sbr.rel (%p600) target = $region64
        $region63: #{tpu_custom_call.1} parent=39 // pred_region
          %v604 = vld [vmem:[#allocation2] sm:$0xff]
          %605 = vst [vmem:[%s359] sm:$0xff] %v604
        $region64: #{tpu_custom_call.1} parent=39 // pred_fallthru
          _
        %s606 = sand.u32 %s188, 1
        %s607 = scalar_lea.sflag [#allocation6], %s606
        %s608 = sand.u32 %s188, 1
        %s609 = smul.addr %s608, 8
        %s610 = scalar_lea.vmem [#allocation9], %s609
        // Predicated region
        $region65: #{tpu_custom_call.1} parent=39 // pred_check
          %p611 = pneg %p198
        $region66: #{tpu_custom_call.1} parent=39 // pred_check_branch
          %613 = sbr.rel (%p611) target = $region68
        $region67: #{tpu_custom_call.1} parent=39 // pred_region
          %615 = vsyncadd %s607, 0
          %s616 = smul.addr %s30, 8
          %s617 = scalar_lea.hbm %s5, %s616
          %s619 = sshll.u32 %s610, 4
          %s620 = int_to_ptr.vmem [resolvable:$true] %s619
          %s621 = sshll.u32 %s617, 4
          %s622 = int_to_ptr.hbm [resolvable:$true] %s621
          %624 = dma.vmem_to_hbm [thread:$0]  %s620, 128, %s622, %s607
        $region68: #{tpu_custom_call.1} parent=39 // pred_fallthru
          _
      $region40: #{tpu_custom_call.1} parent=5 // pred_fallthru
        _
      %p625 = scmp.le.s32.totalorder 2, %s20
      // Predicated region
      $region69: #{tpu_custom_call.1} parent=5 // pred_check
        %p626 = pneg %p625
      $region70: #{tpu_custom_call.1} parent=5 // pred_check_branch
        %628 = sbr.rel (%p626) target = $region72
      $region71: #{tpu_custom_call.1} parent=5 // pred_region
        %s629 = ssub.s32 %s20, 2
        // Predicated region
        $region73: #{tpu_custom_call.1} parent=71 // pred_check
          %p630 = pneg %p204
        $region74: #{tpu_custom_call.1} parent=71 // pred_check_branch
          %632 = sbr.rel (%p630) target = $region76
        $region75: #{tpu_custom_call.1} parent=71 // pred_region
          %s633 = sand.u32 %s189, 1
          %s634 = scalar_lea.sflag [#allocation6], %s633
          %s635 = sand.u32 %s189, 1
          %s636 = smul.addr %s635, 8
          %s637 = scalar_lea.vmem [#allocation9], %s636
          %639 = dma.done %s634, 128
        $region76: #{tpu_custom_call.1} parent=71 // pred_fallthru
          _
      $region72: #{tpu_custom_call.1} parent=5 // pred_fallthru
        _
    $region6: #{tpu_custom_call.1} parent=1 // loop_footer
      %s24 = sadd.s32 1, %s20
    $region7: #{tpu_custom_call.1} parent=1 // loop_footer_branch
      %19 = sbr.rel target = $region3
    $region8: #{tpu_custom_call.1} parent=1 // loop_exit
      _
    %640 = vsyncpa [#allocation5], 1
    %s641 = scalar_lea.sflag [#allocation5], 1
    %642 = vsyncpa %s641, 1
    %643 = vsyncpa [#allocation8], 1
    %s644 = scalar_lea.sflag [#allocation8], 1
    %645 = vsyncpa %s644, 1
    %646 = vsyncpa [#allocation6], 1
    %s647 = scalar_lea.sflag [#allocation6], 1
    %648 = vsyncpa %s647, 1

</llo_original>
